<compile_context>
chip_gen: v7x
topology: tpu7x:2x2x1
jax: 0.10.0
libtpu: 0.0.40
codegen_flags: <defaults>
</compile_context>

<pallas_src>
import functools

import jax
import jax.numpy as jnp
from jax.experimental import pallas as pl
from jax.experimental.pallas import tpu as pltpu

_MIB = 1024 * 1024


def _round_up(v, m):
    return ((v + m - 1) // m) * m


def _vmem_cap_bytes():
    """Physical VMEM of the current generation; conservative fallback (v7x)."""
    try:
        return int(pltpu.get_tpu_info().vmem_capacity_bytes)
    except Exception:
        return 64 * _MIB


def _default_tiles(dtype):
    """(tm, tn, tk, sublane_multiple) defaults per dtype width."""
    itemsize = jnp.dtype(dtype).itemsize
    if itemsize >= 4:          # float32
        return 512, 512, 1024, 8
    if itemsize == 2:          # bfloat16 / float16
        return 512, 512, 2048, 16
    return 512, 512, 4096, 32  # int8 / fp8


def _pick_k_tile(H, tk_max):
    """Reduction tiling must cover H exactly (ragged k blocks would corrupt
    valid outputs).  Returns (tk, Hp) where Hp is the (possibly padded) H."""
    if H <= tk_max:
        return H, H                       # single k step, full-dim block, no pad
    if H % 128 == 0:
        tk = (tk_max // 128) * 128
        while H % tk:
            tk -= 128                     # terminates: 128 divides H
        return tk, H
    # Rare: H larger than one tile and not lane-aligned -> zero-pad H only
    # (zero padding is exact for the dot product).
    Hp = _round_up(H, 128)
    tk = min((tk_max // 128) * 128, Hp)
    while Hp % tk:
        tk -= 128
    return tk, Hp


# ---------------------------------------------------------------------------
# Kernels
# ---------------------------------------------------------------------------
def _linear_kernel(x_ref, w_ref, b_ref, o_ref, acc_ref):
    """One (tm, tn) output tile, accumulated over the H (k) grid axis.

    x_ref: (tm, tk)  activations
    w_ref: (tk, tn)  weight, pre-transposed to (H, O) -- MXU-native, no vxpose
    b_ref: (1, tn)   bias
    o_ref: (tm, tn)  output tile
    acc_ref: (tm, tn) f32 VMEM accumulator, resident across the k axis
    """
    k = pl.program_id(2)

    @pl.when(k == 0)
    def _():
        acc_ref[...] = jnp.zeros_like(acc_ref)

    acc_ref[...] += jnp.dot(x_ref[...], w_ref[...],
                            preferred_element_type=jnp.float32)

    @pl.when(k == pl.num_programs(2) - 1)
    def _():
        o_ref[...] = (acc_ref[...]
                      + b_ref[...].astype(jnp.float32)).astype(o_ref.dtype)


def _linear_kernel_single_k(x_ref, w_ref, b_ref, o_ref):
    """H fits a single tile: no accumulator scratch, no acc read-modify-write."""
    o_ref[...] = (jnp.dot(x_ref[...], w_ref[...],
                          preferred_element_type=jnp.float32)
                  + b_ref[...].astype(jnp.float32)).astype(o_ref.dtype)


# ---------------------------------------------------------------------------
# Wrappers
# ---------------------------------------------------------------------------
def prepare_transform_head_params(weight, bias):
    """One-time (model-load) conversion of torch nn.Linear params.

    weight: (O, H) PyTorch layout -> (H, O) MXU-native layout, transposed ONCE
    here so neither the kernel (per tile) nor the per-call wrapper pays for it.
    bias:   (O,) -> (1, O) lane-dense row.
    """
    w_t = jnp.asarray(weight).T
    b2 = jnp.asarray(bias).reshape(1, -1)
    return w_t, b2


@functools.partial(jax.jit, static_argnames=("tm", "tn", "tk"))
def transform_head_apply(x, w_t, bias2d, *, tm=None, tn=None, tk=None):
    """y = x @ w_t + bias, with w_t already in (H, O) layout.

    x: (B, H), w_t: (H, O), bias2d: (1, O)  ->  (B, O)
    """
    B, H = x.shape
    H2, O = w_t.shape
    assert H2 == H, "weight/activation hidden-size mismatch"

    tm_d, tn_d, tk_d, sublane = _default_tiles(x.dtype)
    tm_max = max(sublane, tm if tm is not None else tm_d)
    tn_max = max(128, tn if tn is not None else tn_d)
    tk_max = max(128, tk if tk is not None else tk_d)

    # --- Reduction (H): must be covered exactly; pad only in the rare case.
    tk_sel, Hp = _pick_k_tile(H, tk_max)
    if Hp != H:
        x = jnp.pad(x, ((0, 0), (0, Hp - H)))
        w_t = jnp.pad(w_t, ((0, Hp - H), (0, 0)))  # rare fallback, zero pad = exact

    # --- Batch (B): one full-dim tile when it fits (minimizes weight
    #     re-streaming: weight HBM bytes = (B tiles) * O * H * itemsize),
    #     otherwise sublane-aligned tiles with a ragged edge block.
    tm_sel = B if B <= tm_max else (tm_max // sublane) * sublane

    # --- Output (O): full-dim tile when it fits, else 128-aligned (lane-dense)
    #     tiles with a ragged edge block -> no per-call padding of the weight.
    tn_sel = O if O <= tn_max else (tn_max // 128) * 128
    # v7x megacore: if the whole batch is a single tile, keep >= 2 output tiles
    # so both TensorCores get work ("parallel" axes shard grid tiles per core).
    if B <= tm_max and O <= tn_max and O >= 256:
        tn_sel = _round_up(pl.cdiv(O, 2), 128)

    grid = (pl.cdiv(B, tm_sel), pl.cdiv(O, tn_sel), Hp // tk_sel)
    single_k = grid[2] == 1

    in_itemsize = jnp.dtype(x.dtype).itemsize
    w_itemsize = jnp.dtype(w_t.dtype).itemsize
    out_itemsize = in_itemsize

    # VMEM footprint (double-buffered inputs/outputs + f32 accumulator),
    # budgeted against the smallest generation (v7x: 64 MiB physical per TC).
    est_vmem = (2 * tm_sel * tk_sel * in_itemsize
                + 2 * tk_sel * tn_sel * w_itemsize
                + 2 * tm_sel * tn_sel * out_itemsize
                + (0 if single_k else tm_sel * tn_sel * 4)
                + 2 * tn_sel * out_itemsize)
    vmem_limit = int(min(_vmem_cap_bytes() * 3 // 4,
                         max(32 * _MIB, 2 * est_vmem)))

    gi, gj, _ = grid
    # bytes_accessed reflects re-streaming: weight once per batch tile,
    # activations once per output tile, output + bias.
    cost = pl.CostEstimate(
        flops=2 * B * Hp * O,
        transcendentals=0,
        bytes_accessed=int(B * Hp * in_itemsize * gj
                           + Hp * O * w_itemsize * gi
                           + O * w_itemsize * gi
                           + B * O * out_itemsize),
    )

    kernel = _linear_kernel_single_k if single_k else _linear_kernel
    scratch = [] if single_k else [pltpu.VMEM((tm_sel, tn_sel), jnp.float32)]

    # NOTE(perf): on v7x, if the profile shows exposed weight DMA, sweep
    # pipeline_mode=pl.Buffered(3) on the weight BlockSpec below.
    return pl.pallas_call(
        kernel,
        out_shape=jax.ShapeDtypeStruct((B, O), x.dtype),
        grid_spec=pltpu.PrefetchScalarGridSpec(
            num_scalar_prefetch=0,
            grid=grid,
            in_specs=[
                # Activations: tiled over (batch, reduction).
                pl.BlockSpec((tm_sel, tk_sel), lambda i, j, k: (i, k)),
                # Weight in (H, O) layout: re-streamed once per batch tile i
                # (unavoidable with k innermost), hence tm is maximized above.
                pl.BlockSpec((tk_sel, tn_sel), lambda i, j, k: (k, j)),
                # Bias: one lane-dense row per output tile.
                pl.BlockSpec((1, tn_sel), lambda i, j, k: (0, j)),
            ],
            out_specs=pl.BlockSpec((tm_sel, tn_sel), lambda i, j, k: (i, j)),
            scratch_shapes=scratch,
        ),
        compiler_params=pltpu.CompilerParams(
            dimension_semantics=("parallel", "parallel", "arbitrary"),
            vmem_limit_bytes=vmem_limit,
        ),
        cost_estimate=cost,
    )(x, w_t, bias2d)


def transform_head(x, weight, bias, **tile_kwargs):
    """torch.nn.Linear forward: y = x @ weight.T + bias.

    weight: (O, H) PyTorch layout, bias: (O,).  For repeated calls, convert the
    params once with prepare_transform_head_params() and call
    transform_head_apply() directly to amortize the layout change.
    """
    w_t, b2 = prepare_transform_head_params(weight, bias)
    return transform_head_apply(x, w_t, b2, **tile_kwargs)


if __name__ == "__main__":
    key = jax.random.PRNGKey(0)
    kx, kw, kb = jax.random.split(key, 3)

    batch, hidden, output = 8, 32, 16

    x = jax.random.normal(kx, (batch, hidden), dtype=jnp.float32)
    # Deterministic synthetic parameters, shapes per nn.Linear(hidden, output).
    weight = jax.random.normal(kw, (output, hidden), dtype=jnp.float32) * 0.05
    bias = jax.random.normal(kb, (output,), dtype=jnp.float32) * 0.05

    y = transform_head(x, weight, bias)
    jax.block_until_ready(y)

    # Cross-check against plain JAX reference (nn.Linear semantics).
    y_ref = x @ weight.T + bias
    assert y.shape == (batch, output)
    assert jnp.allclose(y, y_ref, atol=1e-5, rtol=1e-5)

    print("KERNEL_OK")
</pallas_src>

<mosaic_0001>
module attributes {stable_mosaic.version = 11 : i64} {
  func.func @_linear_kernel_single_k(%arg0: i32, %arg1: i32, %arg2: i32, %arg3: memref<8x32xf32, #tpu.memory_space<vmem>>, %arg4: memref<32x16xf32, #tpu.memory_space<vmem>>, %arg5: memref<1x16xf32, #tpu.memory_space<vmem>>, %arg6: memref<8x16xf32, #tpu.memory_space<vmem>>) attributes {dimension_semantics = [#tpu.dimension_semantics<parallel>, #tpu.dimension_semantics<parallel>, #tpu.dimension_semantics<arbitrary>], iteration_bounds = array<i64: 1, 1, 1>, scalar_prefetch = 0 : i64, scratch_operands = 0 : i64, tpu.core_type = #tpu.core_type<tc>, window_params = [{transform_indices = @transform_0, window_bounds = array<i64: 8, 32>}, {transform_indices = @transform_1, window_bounds = array<i64: 32, 16>}, {transform_indices = @transform_2, window_bounds = array<i64: 1, 16>}, {transform_indices = @transform_3, window_bounds = array<i64: 8, 16>}]} {
    %c0 = arith.constant 0 : index
    %c0_0 = arith.constant 0 : index
    %0 = vector.load %arg3[%c0, %c0_0] : memref<8x32xf32, #tpu.memory_space<vmem>>, vector<8x32xf32>
    %c0_1 = arith.constant 0 : index
    %c0_2 = arith.constant 0 : index
    %1 = vector.load %arg4[%c0_1, %c0_2] : memref<32x16xf32, #tpu.memory_space<vmem>>, vector<32x16xf32>
    %cst = arith.constant dense<0.000000e+00> : vector<8x16xf32>
    %2 = tpu.matmul %0, %1, %cst {dimension_numbers = #tpu.dot_dimension_numbers<[1], [0], [0], [1], [0, 0, 1, 1], [], []>} : vector<8x32xf32>, vector<32x16xf32>, vector<8x16xf32> -> vector<8x16xf32>
    %c0_3 = arith.constant 0 : index
    %c0_4 = arith.constant 0 : index
    %3 = vector.load %arg5[%c0_3, %c0_4] : memref<1x16xf32, #tpu.memory_space<vmem>>, vector<1x16xf32>
    %4 = vector.broadcast %3 : vector<1x16xf32> to vector<8x16xf32>
    %5 = arith.addf %2, %4 : vector<8x16xf32>
    %c0_5 = arith.constant 0 : index
    %c0_6 = arith.constant 0 : index
    %6 = vector.load %arg6[%c0_5, %c0_6] : memref<8x16xf32, #tpu.memory_space<vmem>>, vector<8x16xf32>
    tpu.vector_store %arg6[%c0_5, %c0_6], %5 {strides = array<i32>} : memref<8x16xf32, #tpu.memory_space<vmem>>, vector<8x16xf32>,
    return
  }
  func.func @transform_0(%arg0: i32, %arg1: i32, %arg2: i32) -> (i32, i32) {
    %c0_i32 = arith.constant 0 : i32
    return %arg0, %arg2 : i32, i32
  }
  func.func @transform_1(%arg0: i32, %arg1: i32, %arg2: i32) -> (i32, i32) {
    %c0_i32 = arith.constant 0 : i32
    return %arg2, %arg1 : i32, i32
  }
  func.func @transform_2(%arg0: i32, %arg1: i32, %arg2: i32) -> (i32, i32) {
    %c0_i32 = arith.constant 0 : i32
    %c0_i32_0 = arith.constant 0 : i32
    return %c0_i32, %arg1 : i32, i32
  }
  func.func @transform_3(%arg0: i32, %arg1: i32, %arg2: i32) -> (i32, i32) {
    %c0_i32 = arith.constant 0 : i32
    return %arg0, %arg1 : i32, i32
  }
}

</mosaic_0001>

<llo_original>
// kernel: transform_head_apply.1
$region0: #{transform_head_apply.1}
  #allocation0 [shape = 'u32[]', space=smem, size = 0x4, offset = 0x4, fixed_abs, tag = 'smem constant byte address 0x4 - core index']
  #allocation1 [shape = 'u32[144,128]{1,0:T(1,128)}', space=vmem, size = 0x12000, scoped, tag = 'internal scratch']
  %s0 = inlined_call_operand.vmem [shape: f32[8,32], index: 0, kind: input, shape index: {}]
  %s1 = inlined_call_operand.vmem [shape: f32[32,16], index: 1, kind: input, shape index: {}]
  %s2 = inlined_call_operand.vmem [shape: f32[1,16], index: 2, kind: input, shape index: {}]
  %s3 = inlined_call_operand.hbm [shape: f32[8,16], index: 3, kind: output, shape index: {}]
  %s4 = sld [smem:[#allocation0]]
  $region22: #{transform_head_apply.1} parent=0
    _
  %s6 = ssub.s32 1, %s4
  %s7 = scalar_select 0, %s6, %s4
  $region1: #{transform_head_apply.1} parent=0
    #allocation2 [shape = 'u8[4096]{0}', space=vmem, size = 0x1000, scoped, tag = 'output window, operand 0, single buffered']
    #allocation3 [shape = 's32[1]{0}', space=sflag, size = 0x4, scoped, tag = 'scoped memory for transform_head_apply.1']
    %8 = vsyncpa [#allocation3], 0
    // Predicated region
    $region2: #{transform_head_apply.1} parent=1 // pred_check
      _
    $region3: #{transform_head_apply.1} parent=1 // pred_check_branch
      %10 = sbr.rel (0) target = $region5
    $region4: #{transform_head_apply.1} parent=1 // pred_region
      _
    $region5: #{transform_head_apply.1} parent=1 // pred_fallthru
      _
    // Predicated region
    $region6: #{transform_head_apply.1} parent=1 // pred_check
      _
    $region7: #{transform_head_apply.1} parent=1 // pred_check_branch
      %12 = sbr.rel (0) target = $region9
    $region8: #{transform_head_apply.1} parent=1 // pred_region
      _
    $region9: #{transform_head_apply.1} parent=1 // pred_fallthru
      _
    // Predicated region
    $region10: #{transform_head_apply.1} parent=1 // pred_check
      _
    $region11: #{transform_head_apply.1} parent=1 // pred_check_branch
      %14 = sbr.rel (0) target = $region13
    $region12: #{transform_head_apply.1} parent=1 // pred_region
      _
    $region13: #{transform_head_apply.1} parent=1 // pred_fallthru
      _
    %v15 = vld [vmem:[%s0] sm:$0xff]
    %v16 = vld [vmem:[%s1] sm:$0xff]
    %v17 = vld [vmem:[%s1 + $0x8] sm:$0xff]
    %v18 = vld [vmem:[%s1 + $0x10] sm:$0xff]
    %v19 = vld [vmem:[%s1 + $0x18] sm:$0xff]
    %v20 = vld [vmem:[%s2] sm:$0x1]
    %v22 = vlaneseq
    %v23 = vshrl.u32 %v22, 7
    %v24 = vsub.s32 0, %v23
    %v25 = vrot.slane %v20, %v24
    %vm27 = vcmask 261120
    %v29 = vsel %vm27, %v15, 0
    %31 = vmatprep.subr.mxu0 0.0
    %32 = vmatpush1.msra.mxu0 %v16
    %33 = vmatprep.subr.mxu0 0.0
    %34 = vmatpush1.msra.mxu0 %v17
    %35 = vmatprep.subr.mxu0 0.0
    %36 = vmatpush1.msra.mxu0 %v18
    %37 = vmatprep.subr.mxu0 0.0
    %38 = vmatpush1.msra.mxu0 %v19
    %39 = vmatprep.subr.mxu0 0.0
    %40 = vmatpush1.msra.mxu0 0.0
    %41 = vmatprep.subr.mxu0 0.0
    %42 = vmatpush1.msra.mxu0 0.0
    %43 = vmatprep.subr.mxu0 0.0
    %44 = vmatpush1.msra.mxu0 0.0
    %45 = vmatprep.subr.mxu0 0.0
    %46 = vmatpush1.msra.mxu0 0.0
    %47 = vmatprep.subr.mxu0 0.0
    %48 = vmatpush1.msra.mxu0 0.0
    %49 = vmatprep.subr.mxu0 0.0
    %50 = vmatpush1.msra.mxu0 0.0
    %51 = vmatprep.subr.mxu0 0.0
    %52 = vmatpush1.msra.mxu0 0.0
    %53 = vmatprep.subr.mxu0 0.0
    %54 = vmatpush1.msra.mxu0 0.0
    %55 = vmatprep.subr.mxu0 0.0
    %56 = vmatpush1.msra.mxu0 0.0
    %57 = vmatprep.subr.mxu0 0.0
    %58 = vmatpush1.msra.mxu0 0.0
    %59 = vmatprep.subr.mxu0 0.0
    %60 = vmatpush1.msra.mxu0 0.0
    %61 = vmatprep.subr.mxu0 0.0
    %62 = vmatpush1.msra.mxu0 0.0
    %63 = vmatprep.subr.mxu0 0.0
    %64 = vmatpush1.msra.mxu0 0.0
    %65 = vmatprep.subr.mxu0 0.0
    %66 = vmatpush1.msra.mxu0 0.0
    %67 = vmatprep.subr.mxu0 0.0
    %68 = vmatpush1.msra.mxu0 0.0
    %69 = vmatprep.subr.mxu0 0.0
    %70 = vmatpush1.msra.mxu0 0.0
    %71 = vmatprep.subr.mxu0 0.0
    %72 = vmatpush1.msra.mxu0 0.0
    %73 = vmatprep.subr.mxu0 0.0
    %74 = vmatpush1.msra.mxu0 0.0
    %75 = vmatprep.subr.mxu0 0.0
    %76 = vmatpush1.msra.mxu0 0.0
    %77 = vmatprep.subr.mxu0 0.0
    %78 = vmatpush1.msra.mxu0 0.0
    %79 = vmatprep.subr.mxu0 0.0
    %80 = vmatpush1.msra.mxu0 0.0
    %81 = vmatprep.subr.mxu0 0.0
    %82 = vmatpush1.msra.mxu0 0.0
    %83 = vmatprep.subr.mxu0 0.0
    %84 = vmatpush1.msra.mxu0 0.0
    %85 = vmatprep.subr.mxu0 0.0
    %86 = vmatpush1.msra.mxu0 0.0
    %87 = vmatprep.subr.mxu0 0.0
    %88 = vmatpush1.msra.mxu0 0.0
    %89 = vmatprep.subr.mxu0 0.0
    %90 = vmatpush1.msra.mxu0 0.0
    %91 = vmatprep.subr.mxu0 0.0
    %92 = vmatpush1.msra.mxu0 0.0
    %93 = vmatprep.subr.mxu0 0.0
    %94 = vmatpush1.msra.mxu0 0.0
    %95 = vmatprep.mubr.f32.mxu0 0.0
    %96 = vmatmul.mubr.f32.gmra.mrb[0].mxu0 %v29
    %v97 = vpop.f32.mrb[0].mxu0
    %v98 = vadd.f32 %v25, %v97
    %v99 = vpop.f32.mrb[0].mxu0
    %100 = vdwg.mxu0
    %vm101 = vcmask 130048
    %102 = vst.msk [vmem:[#allocation2] sm:$0xff] %vm101, %v98
    // Predicated region
    $region14: #{transform_head_apply.1} parent=1 // pred_check
      _
    $region15: #{transform_head_apply.1} parent=1 // pred_check_branch
      %104 = sbr.rel (0) target = $region17
    $region16: #{transform_head_apply.1} parent=1 // pred_region
      %s106 = ssub.s32 128, 128
      %107 = vsyncadd [#allocation3], %s106
      %s109 = sshll.u32 [#allocation2], 4
      %s110 = int_to_ptr.vmem [resolvable:$true] %s109
      %112 = dma.vmem_to_hbm [thread:$0]  %s110, 128, %s3, [#allocation3]
    $region17: #{transform_head_apply.1} parent=1 // pred_fallthru
      _
    // Predicated region
    $region18: #{transform_head_apply.1} parent=1 // pred_check
      _
    $region19: #{transform_head_apply.1} parent=1 // pred_check_branch
      %114 = sbr.rel (0) target = $region21
    $region20: #{transform_head_apply.1} parent=1 // pred_region
      %115 = dma.done [#allocation3], 128
    $region21: #{transform_head_apply.1} parent=1 // pred_fallthru
      _
    %116 = vsyncpa [#allocation3], 1

</llo_original>
